<compile_context>
chip_gen: v5e
topology: v5e:2x2
jax: 0.10.0
libtpu: 0.0.40
codegen_flags: <defaults>
</compile_context>

<pallas_src>
import functools
import math

import jax
import jax.numpy as jnp
from jax.experimental import pallas as pl
from jax.experimental.pallas import tpu as pltpu


_COMPUTE_DTYPE = jnp.bfloat16   # MXU-native input dtype; accumulation is f32.
_LANE = 128


def _round_up(x, m):
    return ((x + m - 1) // m) * m


def _pad2d(a, rows, cols, dtype):
    r, c = a.shape
    if r != rows or c != cols:
        a = jnp.pad(a, ((0, rows - r), (0, cols - c)))
    return a.astype(dtype)


def _divisor_tile(dim, max_tile):
    """Largest tile <= max_tile dividing dim (dim is a multiple of 128)."""
    if dim <= max_tile:
        return dim
    t = max_tile
    while dim % t:
        t //= 2
    return t


def _vmem_limit(block_bytes):
    """Scoped-VMEM request sized from the actual block footprint."""
    return int(min(max(block_bytes + (4 << 20), 32 << 20), 128 << 20))


def _const_block_spec(block_shape, index_map, single_buffer):
    """BlockSpec for a grid-invariant operand; single-buffered when requested."""
    if single_buffer:
        return pl.BlockSpec(block_shape, index_map, pipeline_mode=pl.Buffered(1))
    return pl.BlockSpec(block_shape, index_map)


# ----------------------------------------------------------------------------
# Pallas kernels
# ----------------------------------------------------------------------------
def _matmul_kernel(*refs, use_bias, acc_in_out):
    """o = A @ B (+ bias).  Grid = (row tiles, F tiles, K tiles); K is last.

    When acc_in_out=True the f32 output block itself is the accumulator (its
    block index is constant across K), so no VMEM scratch is needed.
    """
    if acc_in_out:
        if use_bias:
            a_ref, b_ref, bias_ref, o_ref = refs
        else:
            a_ref, b_ref, o_ref = refs
            bias_ref = None
        acc_ref = o_ref
    else:
        if use_bias:
            a_ref, b_ref, bias_ref, o_ref, acc_ref = refs
        else:
            a_ref, b_ref, o_ref, acc_ref = refs
            bias_ref = None

    k = pl.program_id(2)

    @pl.when(k == 0)
    def _():
        acc_ref[...] = jnp.zeros_like(acc_ref)

    acc_ref[...] += jnp.dot(a_ref[...], b_ref[...],
                            preferred_element_type=jnp.float32)

    if use_bias or not acc_in_out:
        @pl.when(k == pl.num_programs(2) - 1)
        def _():
            if acc_in_out:
                o_ref[...] += bias_ref[...]          # (1, tn) broadcasts
            else:
                out = acc_ref[...]
                if use_bias:
                    out = out + bias_ref[...]
                o_ref[...] = out.astype(o_ref.dtype)


def _fused_gcn_kernel(*refs, use_bias):
    """o = (A @ X) @ W (+ bias).

    A row-tile of A @ X is accumulated in an f32 VMEM scratch over the K grid
    axis; the final projection by W (and bias add) happens once, at the last K
    step, and is written straight to the f32 output block.
    """
    if use_bias:
        a_ref, x_ref, w_ref, bias_ref, o_ref, acc_ref = refs
    else:
        a_ref, x_ref, w_ref, o_ref, acc_ref = refs
        bias_ref = None

    k = pl.program_id(1)

    @pl.when(k == 0)
    def _():
        acc_ref[...] = jnp.zeros_like(acc_ref)

    acc_ref[...] += jnp.dot(a_ref[...], x_ref[...],
                            preferred_element_type=jnp.float32)

    @pl.when(k == pl.num_programs(1) - 1)
    def _():
        out = jnp.dot(acc_ref[...].astype(w_ref.dtype), w_ref[...],
                      preferred_element_type=jnp.float32)
        if use_bias:
            out = out + bias_ref[...]
        o_ref[...] = out.astype(o_ref.dtype)


# ----------------------------------------------------------------------------
# pallas_call wrappers (inputs already padded: rows % tm == 0, K % tk == 0,
# last dims multiples of 128)
# ----------------------------------------------------------------------------
def _tiled_matmul(a, b, bias=None, *, tm, tk, out_dtype=jnp.float32):
    m, kdim = a.shape
    f = b.shape[1]
    tn = _divisor_tile(f, 512)            # lane-dense, VMEM-bounded F tile
    use_bias = bias is not None
    acc_in_out = out_dtype == jnp.float32

    in_specs = [
        pl.BlockSpec((tm, tk), lambda i, j, k: (i, k)),
        pl.BlockSpec((tk, tn), lambda i, j, k: (k, j)),
    ]
    args = [a, b]
    if use_bias:
        in_specs.append(pl.BlockSpec((1, tn), lambda i, j, k: (0, j)))
        args.append(bias)

    scratch_shapes = []
    if not acc_in_out:
        scratch_shapes.append(pltpu.VMEM((tm, tn), jnp.float32))

    a_is = jnp.dtype(a.dtype).itemsize
    b_is = jnp.dtype(b.dtype).itemsize
    o_is = jnp.dtype(out_dtype).itemsize
    block_bytes = (2 * tm * tk * a_is + 2 * tk * tn * b_is
                   + 2 * tm * tn * o_is
                   + (0 if acc_in_out else tm * tn * 4)
                   + (2 * tn * 4 if use_bias else 0))

    return pl.pallas_call(
        functools.partial(_matmul_kernel, use_bias=use_bias,
                          acc_in_out=acc_in_out),
        out_shape=jax.ShapeDtypeStruct((m, f), out_dtype),
        grid_spec=pltpu.PrefetchScalarGridSpec(
            num_scalar_prefetch=0,
            grid=(m // tm, f // tn, kdim // tk),
            in_specs=in_specs,
            out_specs=pl.BlockSpec((tm, tn), lambda i, j, k: (i, j)),
            scratch_shapes=scratch_shapes,
        ),
        compiler_params=pltpu.CompilerParams(
            dimension_semantics=("parallel", "parallel", "arbitrary"),
            vmem_limit_bytes=_vmem_limit(block_bytes)),
    )(*args)


def _tiled_fused_gcn(a, x, w, bias=None, *, tm, tk):
    m, kdim = a.shape
    f_in = x.shape[1]
    f_out = w.shape[1]
    use_bias = bias is not None

    a_is = jnp.dtype(a.dtype).itemsize
    x_is = jnp.dtype(x.dtype).itemsize
    w_is = jnp.dtype(w.dtype).itemsize

    def build(single_buffer):
        in_specs = [
            pl.BlockSpec((tm, tk), lambda i, k: (i, k)),
            pl.BlockSpec((tk, f_in), lambda i, k: (k, 0)),
            _const_block_spec((f_in, f_out), lambda i, k: (0, 0), single_buffer),
        ]
        args = [a, x, w]
        if use_bias:
            in_specs.append(
                _const_block_spec((1, f_out), lambda i, k: (0, 0), single_buffer))
            args.append(bias)

        w_bufs = 1 if single_buffer else 2
        block_bytes = (2 * tm * tk * a_is + 2 * tk * f_in * x_is
                       + w_bufs * f_in * f_out * w_is
                       + 2 * tm * f_out * 4        # f32 output blocks
                       + tm * f_in * 4             # f32 accumulator
                       + (w_bufs * f_out * 4 if use_bias else 0))

        call = pl.pallas_call(
            functools.partial(_fused_gcn_kernel, use_bias=use_bias),
            out_shape=jax.ShapeDtypeStruct((m, f_out), jnp.float32),
            grid_spec=pltpu.PrefetchScalarGridSpec(
                num_scalar_prefetch=0,
                grid=(m // tm, kdim // tk),
                in_specs=in_specs,
                out_specs=pl.BlockSpec((tm, f_out), lambda i, k: (i, 0)),
                scratch_shapes=[pltpu.VMEM((tm, f_in), jnp.float32)],
            ),
            compiler_params=pltpu.CompilerParams(
                dimension_semantics=("parallel", "arbitrary"),
                vmem_limit_bytes=_vmem_limit(block_bytes)),
        )
        return call, args

    try:
        call, args = build(True)          # single-buffer the constant W / bias
        return call(*args)
    except Exception:                      # pl.Buffered(1) unsupported: default
        call, args = build(False)
        return call(*args)


# ----------------------------------------------------------------------------
# GraphConvolution forward
# ----------------------------------------------------------------------------
def graph_convolution(x, adj, weight, bias=None, adp_w=None):
    """Pallas forward of GraphConvolution.

    x:      (N, F_in)   float32
    adj:    (N, N)      float32 (dense form of the sparse adjacency)
    weight: (F_in, F_out)
    bias:   (F_out,) or None
    adp_w:  (N, N) dense form of the adaptive sparse adjacency, or None
    """
    n, f_in = x.shape
    f_out = weight.shape[1]

    # Row tile: biggest of {512, 256, 128} that keeps >= 2 row tiles so the
    # "parallel" axis can shard across v7x's two TensorCores; 128 keeps the
    # padding small for tiny graphs.
    tm = 128
    for cand in (512, 256):
        if _round_up(n, cand) // cand >= 2:
            tm = cand
            break

    n_p = _round_up(n, tm)
    f_in_p = _round_up(f_in, _LANE)
    f_out_p = _round_up(f_out, _LANE)

    tk_adj = _divisor_tile(n_p, 256)      # adjacency-reduction tile
    tk_feat = _divisor_tile(f_in_p, 512)  # X @ W reduction tile

    # bf16 MXU inputs (f32 accumulation in-kernel); bias stays f32.
    x_p = _pad2d(x, n_p, f_in_p, _COMPUTE_DTYPE)
    adj_p = _pad2d(adj, n_p, n_p, _COMPUTE_DTYPE)
    w_p = _pad2d(weight, f_in_p, f_out_p, _COMPUTE_DTYPE)

    bias_p = None
    if bias is not None:
        bias_p = _pad2d(bias.reshape(1, f_out), 1, f_out_p, jnp.float32)

    adp_p = None
    if adp_w is not None:
        # TODO(synk): exploit adp's COO sparsity with a scalar-prefetch
        # block-sparse kernel (skip all-zero column blocks) instead of a
        # densified N x N matmul.
        adp_p = _pad2d(adp_w, n_p, n_p, _COMPUTE_DTYPE)

    # Fused ((adj @ X) @ W) kernel only while its VMEM footprint (full-width
    # f32 output blocks + single-buffered W + f32 accumulator) stays well under
    # v7x's 64 MiB; otherwise do the same reassociated chain with separate
    # F-tiled matmuls.
    fused_bytes = (2 * tm * f_out_p * 4 + f_in_p * f_out_p * 2
                   + tm * f_in_p * 4
                   + 2 * tm * tk_adj * 2 + 2 * tk_adj * f_in_p * 2)
    use_fused = fused_bytes <= (24 << 20)

    if f_in <= f_out:
        # Reassociated: ((adp @ (adj @ X)) @ W) + b  -> N x N work over F_in.
        if use_fused:
            if adp_p is None:
                out_p = _tiled_fused_gcn(adj_p, x_p, w_p, bias_p,
                                         tm=tm, tk=tk_adj)
            else:
                t = _tiled_matmul(adj_p, x_p, tm=tm, tk=tk_adj,
                                  out_dtype=_COMPUTE_DTYPE)          # adj @ X
                out_p = _tiled_fused_gcn(adp_p, t, w_p, bias_p,
                                         tm=tm, tk=tk_adj)
        else:
            t = _tiled_matmul(adj_p, x_p, tm=tm, tk=tk_adj,
                              out_dtype=_COMPUTE_DTYPE)              # adj @ X
            if adp_p is not None:
                t = _tiled_matmul(adp_p, t, tm=tm, tk=tk_adj,
                                  out_dtype=_COMPUTE_DTYPE)          # adp @ t
            out_p = _tiled_matmul(t, w_p, bias_p, tm=tm, tk=tk_feat)  # t @ W
    else:
        # Original order: adp @ (adj @ (X @ W)) + b  -> N x N work over F_out.
        s = _tiled_matmul(x_p, w_p, tm=tm, tk=tk_feat,
                          out_dtype=_COMPUTE_DTYPE)                  # X @ W
        if adp_p is None:
            out_p = _tiled_matmul(adj_p, s, bias_p, tm=tm, tk=tk_adj)
        else:
            t = _tiled_matmul(adj_p, s, tm=tm, tk=tk_adj,
                              out_dtype=_COMPUTE_DTYPE)              # adj @ S
            out_p = _tiled_matmul(adp_p, t, bias_p, tm=tm, tk=tk_adj)

    return out_p[:n, :f_out]


# ----------------------------------------------------------------------------
# Reference (pure JAX, f32) for correctness checking
# ----------------------------------------------------------------------------
def graph_convolution_ref(x, adj, weight, bias=None, adp_w=None):
    support = x @ weight
    out = adj @ support
    if adp_w is not None:
        out = adp_w @ out
    if bias is not None:
        out = out + bias
    return out


# ----------------------------------------------------------------------------
# Main
# ----------------------------------------------------------------------------
if __name__ == "__main__":
    key = jax.random.PRNGKey(0)
    k_x, k_adj, k_w, k_b, k_e, k_x2, k_w2, k_big = jax.random.split(key, 8)

    def make_adj(k, n):
        a = (jax.random.uniform(k, (n, n)) < 0.3).astype(jnp.float32)
        a = a + jnp.eye(n, dtype=jnp.float32)
        return a / jnp.sum(a, axis=1, keepdims=True)

    def make_adp(k, n, num_edges):
        rows = jax.random.randint(k, (num_edges,), 0, n)
        cols = jax.random.randint(jax.random.fold_in(k, 1), (num_edges,), 0, n)
        return jnp.zeros((n, n), jnp.float32).at[rows, cols].set(1.0)

    def check(out, ref, name):
        # bf16 MXU inputs -> compare against f32 reference at bf16 tolerance.
        err = float(jnp.max(jnp.abs(out - ref)))
        scale = float(jnp.max(jnp.abs(ref))) + 1e-6
        assert err / scale < 5e-2, f"mismatch ({name}): rel err {err / scale}"

    # Small shapes consistent with the module: N nodes, in -> out features.
    N, in_features, out_features = 16, 32, 64
    x = jax.random.normal(k_x, (N, in_features), dtype=jnp.float32)
    adj = make_adj(k_adj, N)

    # Parameters, initialized like reset_parameters(): uniform(-stdv, stdv).
    stdv = 1.0 / math.sqrt(out_features)
    weight = jax.random.uniform(k_w, (in_features, out_features),
                                minval=-stdv, maxval=stdv, dtype=jnp.float32)
    bias = jax.random.uniform(k_b, (out_features,),
                              minval=-stdv, maxval=stdv, dtype=jnp.float32)
    adp_w = make_adp(k_e, N, 40)     # densified COO adaptive adjacency

    # Full path: adp + bias (F_in <= F_out -> fused reassociated chain).
    out = jax.block_until_ready(
        graph_convolution(x, adj, weight, bias=bias, adp_w=adp_w))
    assert out.shape == (N, out_features)
    check(out, graph_convolution_ref(x, adj, weight, bias, adp_w), "adp+bias")

    # No adp / no bias: a single fused pallas_call, no dummy operands.
    out2 = jax.block_until_ready(graph_convolution(x, adj, weight))
    check(out2, graph_convolution_ref(x, adj, weight), "plain")

    # F_in > F_out exercises the non-reassociated (X @ W first) branch.
    x2 = jax.random.normal(k_x2, (N, out_features), dtype=jnp.float32)
    stdv2 = 1.0 / math.sqrt(in_features)
    weight2 = jax.random.uniform(k_w2, (out_features, in_features),
                                 minval=-stdv2, maxval=stdv2, dtype=jnp.float32)
    out3 = jax.block_until_ready(
        graph_convolution(x2, adj, weight2, bias=None, adp_w=adp_w))
    check(out3, graph_convolution_ref(x2, adj, weight2, None, adp_w), "XW-first")

    # Multi-tile case: several row tiles and several reduction steps
    # (exercises pl.when init/finalize, megacore axis, bf16 intermediates).
    kb1, kb2, kb3, kb4, kb5 = jax.random.split(k_big, 5)
    N4, fi4, fo4 = 300, 96, 160
    x4 = jax.random.normal(kb1, (N4, fi4), dtype=jnp.float32)
    adj4 = make_adj(kb2, N4)
    stdv4 = 1.0 / math.sqrt(fo4)
    w4 = jax.random.uniform(kb3, (fi4, fo4), minval=-stdv4, maxval=stdv4,
                            dtype=jnp.float32)
    b4 = jax.random.uniform(kb4, (fo4,), minval=-stdv4, maxval=stdv4,
                            dtype=jnp.float32)
    adp4 = make_adp(kb5, N4, 600)
    out4 = jax.block_until_ready(
        graph_convolution(x4, adj4, w4, bias=b4, adp_w=adp4))
    check(out4, graph_convolution_ref(x4, adj4, w4, b4, adp4), "multi-tile")

    # Multi-tile, F_in > F_out: multi-step accumulation directly into o_ref.
    x5 = jax.random.normal(kb1, (N4, fo4), dtype=jnp.float32)
    w5 = jax.random.uniform(kb3, (fo4, fi4), minval=-stdv4, maxval=stdv4,
                            dtype=jnp.float32)
    b5 = jax.random.uniform(kb4, (fi4,), minval=-stdv4, maxval=stdv4,
                            dtype=jnp.float32)
    out5 = jax.block_until_ready(graph_convolution(x5, adj4, w5, bias=b5))
    check(out5, graph_convolution_ref(x5, adj4, w5, b5), "multi-tile-XW-first")

    print("KERNEL_OK")
</pallas_src>

<mosaic_0001>
module attributes {stable_mosaic.version = 11 : i64} {
  func.func @_matmul_kernel(%arg0: i32, %arg1: i32, %arg2: i32, %arg3: memref<128x128xbf16, #tpu.memory_space<vmem>>, %arg4: memref<128x128xbf16, #tpu.memory_space<vmem>>, %arg5: memref<128x128xbf16, #tpu.memory_space<vmem>>, %arg6: memref<128x128xf32, #tpu.memory_space<vmem>>) attributes {dimension_semantics = [#tpu.dimension_semantics<parallel>, #tpu.dimension_semantics<parallel>, #tpu.dimension_semantics<arbitrary>], iteration_bounds = array<i64: 1, 1, 1>, scalar_prefetch = 0 : i64, scratch_operands = 1 : i64, tpu.core_type = #tpu.core_type<tc>, window_params = [{transform_indices = @transform_0, window_bounds = array<i64: 128, 128>}, {transform_indices = @transform_1, window_bounds = array<i64: 128, 128>}, {transform_indices = @transform_2, window_bounds = array<i64: 128, 128>}]} {
    %c0_i32 = arith.constant 0 : i32
    %0 = arith.cmpi eq, %arg2, %c0_i32 : i32
    %1 = arith.extui %0 : i1 to i32
    %c0_i32_0 = arith.constant 0 : i32
    %2 = arith.cmpi ne, %1, %c0_i32_0 : i32
    scf.if %2 {
      %cst_10 = arith.constant 0.000000e+00 : f32
      %12 = vector.broadcast %cst_10 : f32 to vector<128x128xf32>
      %c0_11 = arith.constant 0 : index
      %c0_12 = arith.constant 0 : index
      %13 = vector.load %arg6[%c0_11, %c0_12] : memref<128x128xf32, #tpu.memory_space<vmem>>, vector<128x128xf32>
      tpu.vector_store %arg6[%c0_11, %c0_12], %12 {strides = array<i32>} : memref<128x128xf32, #tpu.memory_space<vmem>>, vector<128x128xf32>,
    } else {
    }
    %c0 = arith.constant 0 : index
    %c0_1 = arith.constant 0 : index
    %3 = vector.load %arg6[%c0, %c0_1] : memref<128x128xf32, #tpu.memory_space<vmem>>, vector<128x128xf32>
    %c0_2 = arith.constant 0 : index
    %c0_3 = arith.constant 0 : index
    %4 = vector.load %arg3[%c0_2, %c0_3] : memref<128x128xbf16, #tpu.memory_space<vmem>>, vector<128x128xbf16>
    %c0_4 = arith.constant 0 : index
    %c0_5 = arith.constant 0 : index
    %5 = vector.load %arg4[%c0_4, %c0_5] : memref<128x128xbf16, #tpu.memory_space<vmem>>, vector<128x128xbf16>
    %cst = arith.constant dense<0.000000e+00> : vector<128x128xf32>
    %6 = tpu.matmul %4, %5, %cst {dimension_numbers = #tpu.dot_dimension_numbers<[1], [0], [0], [1], [0, 0, 1, 1], [], []>} : vector<128x128xbf16>, vector<128x128xbf16>, vector<128x128xf32> -> vector<128x128xf32>
    %7 = arith.addf %3, %6 : vector<128x128xf32>
    %c0_6 = arith.constant 0 : index
    %c0_7 = arith.constant 0 : index
    %8 = vector.load %arg6[%c0_6, %c0_7] : memref<128x128xf32, #tpu.memory_space<vmem>>, vector<128x128xf32>
    tpu.vector_store %arg6[%c0_6, %c0_7], %7 {strides = array<i32>} : memref<128x128xf32, #tpu.memory_space<vmem>>, vector<128x128xf32>,
    %c0_i32_8 = arith.constant 0 : i32
    %9 = arith.cmpi eq, %arg2, %c0_i32_8 : i32
    %10 = arith.extui %9 : i1 to i32
    %c0_i32_9 = arith.constant 0 : i32
    %11 = arith.cmpi ne, %10, %c0_i32_9 : i32
    scf.if %11 {
      %c0_10 = arith.constant 0 : index
      %c0_11 = arith.constant 0 : index
      %12 = vector.load %arg6[%c0_10, %c0_11] : memref<128x128xf32, #tpu.memory_space<vmem>>, vector<128x128xf32>
      %13 = arith.truncf %12 : vector<128x128xf32> to vector<128x128xbf16>
      %c0_12 = arith.constant 0 : index
      %c0_13 = arith.constant 0 : index
      %14 = vector.load %arg5[%c0_12, %c0_13] : memref<128x128xbf16, #tpu.memory_space<vmem>>, vector<128x128xbf16>
      tpu.vector_store %arg5[%c0_12, %c0_13], %13 {strides = array<i32>} : memref<128x128xbf16, #tpu.memory_space<vmem>>, vector<128x128xbf16>,
    } else {
    }
    return
  }
  func.func @transform_0(%arg0: i32, %arg1: i32, %arg2: i32) -> (i32, i32) {
    %c0_i32 = arith.constant 0 : i32
    return %arg0, %arg2 : i32, i32
  }
  func.func @transform_1(%arg0: i32, %arg1: i32, %arg2: i32) -> (i32, i32) {
    %c0_i32 = arith.constant 0 : i32
    return %arg2, %arg1 : i32, i32
  }
  func.func @transform_2(%arg0: i32, %arg1: i32, %arg2: i32) -> (i32, i32) {
    %c0_i32 = arith.constant 0 : i32
    return %arg0, %arg1 : i32, i32
  }
}

</mosaic_0001>

<llo_original>
// kernel: tpu_custom_call.1
$region0: #{tpu_custom_call.1}
  #allocation0 [shape = 'u32[]', space=smem, size = 0x4, offset = 0x4, fixed_abs, tag = 'smem constant byte address 0x4 - core index']
  #allocation1 [shape = 'u32[72,128]{1,0:T(1,128)}', space=vmem, size = 0x9000, scoped, tag = 'internal scratch']
  #allocation2 [shape = 'f32[128,128]{1,0:T(8,128)}', space=vmem, size = 0x10000, scoped, tag = 'scratch operand']
  %s0 = inlined_call_operand.hbm [shape: bf16[128,128], index: 0, kind: input, shape index: {}]
  %s1 = inlined_call_operand.hbm [shape: bf16[128,128], index: 1, kind: input, shape index: {}]
  %s2 = inlined_call_operand.hbm [shape: bf16[128,128], index: 2, kind: output, shape index: {}]
  %s3 = sld [smem:[#allocation0]]
  $region34: #{tpu_custom_call.1} parent=0
    _
  %s5 = ssub.s32 1, %s3
  %s6 = scalar_select 0, %s5, %s3
  $region1: #{tpu_custom_call.1} parent=0
    #allocation3 [shape = 'u8[32768]{0}', space=vmem, size = 0x8000, scoped, tag = 'input window, operand 0, single buffered']
    #allocation4 [shape = 's32[1]{0}', space=sflag, size = 0x4, scoped, tag = 'scoped memory for tpu_custom_call.1']
    #allocation5 [shape = 's32[1]{0}', space=sflag, size = 0x4, scoped, tag = 'scoped memory for tpu_custom_call.1']
    #allocation6 [shape = 'u8[32768]{0}', space=vmem, size = 0x8000, scoped, tag = 'input window, operand 1, single buffered']
    #allocation7 [shape = 's32[1]{0}', space=sflag, size = 0x4, scoped, tag = 'scoped memory for tpu_custom_call.1']
    #allocation8 [shape = 'u8[32768]{0}', space=vmem, size = 0x8000, scoped, tag = 'output window, operand 0, single buffered']
    %7 = vsyncpa [#allocation4], 0
    %8 = vsyncpa [#allocation7], 0
    %9 = vsyncpa [#allocation5], 0
    // Predicated region
    $region2: #{tpu_custom_call.1} parent=1 // pred_check
      _
    $region3: #{tpu_custom_call.1} parent=1 // pred_check_branch
      %11 = sbr.rel (0) target = $region5
    $region4: #{tpu_custom_call.1} parent=1 // pred_region
      %13 = vsyncadd [#allocation4], 0
      %s14 = sshll.u32 %s0, 4
      %s15 = int_to_ptr.hbm [resolvable:$true] %s14
      %s16 = sshll.u32 [#allocation3], 4
      %s17 = int_to_ptr.vmem [resolvable:$true] %s16
      %22 = dma.hbm_to_vmem [thread:$0]  %s15, 1024, %s17, [#allocation4], 64, 64, 4
    $region5: #{tpu_custom_call.1} parent=1 // pred_fallthru
      _
    // Predicated region
    $region6: #{tpu_custom_call.1} parent=1 // pred_check
      _
    $region7: #{tpu_custom_call.1} parent=1 // pred_check_branch
      %24 = sbr.rel (0) target = $region9
    $region8: #{tpu_custom_call.1} parent=1 // pred_region
      %26 = vsyncadd [#allocation7], 0
      %s27 = sshll.u32 %s1, 4
      %s28 = int_to_ptr.hbm [resolvable:$true] %s27
      %s29 = sshll.u32 [#allocation6], 4
      %s30 = int_to_ptr.vmem [resolvable:$true] %s29
      %35 = dma.hbm_to_vmem [thread:$0]  %s28, 1024, %s30, [#allocation7], 64, 64, 4
    $region9: #{tpu_custom_call.1} parent=1 // pred_fallthru
      _
    // Predicated region
    $region10: #{tpu_custom_call.1} parent=1 // pred_check
      _
    $region11: #{tpu_custom_call.1} parent=1 // pred_check_branch
      %37 = sbr.rel (0) target = $region13
    $region12: #{tpu_custom_call.1} parent=1 // pred_region
      %39 = dma.done [#allocation4], 1024
    $region13: #{tpu_custom_call.1} parent=1 // pred_fallthru
      _
    // Predicated region
    $region14: #{tpu_custom_call.1} parent=1 // pred_check
      _
    $region15: #{tpu_custom_call.1} parent=1 // pred_check_branch
      %41 = sbr.rel (0) target = $region17
    $region16: #{tpu_custom_call.1} parent=1 // pred_region
      %43 = dma.done [#allocation7], 1024
    $region17: #{tpu_custom_call.1} parent=1 // pred_fallthru
      _
    %p44 = scmp.eq.s32.totalorder 0, 0
    // Predicated region
    $region18: #{tpu_custom_call.1} parent=1 // pred_check
      %p45 = pneg %p44
    $region19: #{tpu_custom_call.1} parent=1 // pred_check_branch
      %47 = sbr.rel (%p45) target = $region21
    $region20: #{tpu_custom_call.1} parent=1 // pred_region
      %48 = vst [vmem:[#allocation2] sm:$0xff] 0.0
      %49 = vst [vmem:[#allocation2 + $0x8] sm:$0xff] 0.0
      %50 = vst [vmem:[#allocation2 + $0x10] sm:$0xff] 0.0
      %51 = vst [vmem:[#allocation2 + $0x18] sm:$0xff] 0.0
      %52 = vst [vmem:[#allocation2 + $0x20] sm:$0xff] 0.0
      %53 = vst [vmem:[#allocation2 + $0x28] sm:$0xff] 0.0
      %54 = vst [vmem:[#allocation2 + $0x30] sm:$0xff] 0.0
      %55 = vst [vmem:[#allocation2 + $0x38] sm:$0xff] 0.0
      %56 = vst [vmem:[#allocation2 + $0x40] sm:$0xff] 0.0
      %57 = vst [vmem:[#allocation2 + $0x48] sm:$0xff] 0.0
      %58 = vst [vmem:[#allocation2 + $0x50] sm:$0xff] 0.0
      %59 = vst [vmem:[#allocation2 + $0x58] sm:$0xff] 0.0
      %60 = vst [vmem:[#allocation2 + $0x60] sm:$0xff] 0.0
      %61 = vst [vmem:[#allocation2 + $0x68] sm:$0xff] 0.0
      %62 = vst [vmem:[#allocation2 + $0x70] sm:$0xff] 0.0
      %63 = vst [vmem:[#allocation2 + $0x78] sm:$0xff] 0.0
    $region21: #{tpu_custom_call.1} parent=1 // pred_fallthru
      _
    %v64 = vld [vmem:[#allocation2] sm:$0xff]
    %v65 = vld [vmem:[#allocation2 + $0x8] sm:$0xff]
    %v66 = vld [vmem:[#allocation2 + $0x10] sm:$0xff]
    %v67 = vld [vmem:[#allocation2 + $0x18] sm:$0xff]
    %v68 = vld [vmem:[#allocation2 + $0x20] sm:$0xff]
    %v69 = vld [vmem:[#allocation2 + $0x28] sm:$0xff]
    %v70 = vld [vmem:[#allocation2 + $0x30] sm:$0xff]
    %v71 = vld [vmem:[#allocation2 + $0x38] sm:$0xff]
    %v72 = vld [vmem:[#allocation2 + $0x40] sm:$0xff]
    %v73 = vld [vmem:[#allocation2 + $0x48] sm:$0xff]
    %v74 = vld [vmem:[#allocation2 + $0x50] sm:$0xff]
    %v75 = vld [vmem:[#allocation2 + $0x58] sm:$0xff]
    %v76 = vld [vmem:[#allocation2 + $0x60] sm:$0xff]
    %v77 = vld [vmem:[#allocation2 + $0x68] sm:$0xff]
    %v78 = vld [vmem:[#allocation2 + $0x70] sm:$0xff]
    %v79 = vld [vmem:[#allocation2 + $0x78] sm:$0xff]
    %v80 = vld [vmem:[#allocation3] sm:$0xf]
    %v81 = vld [vmem:[#allocation3 + $0x4] sm:$0xf]
    %v82 = vld [vmem:[#allocation3 + $0x8] sm:$0xf]
    %v83 = vld [vmem:[#allocation3 + $0xc] sm:$0xf]
    %v84 = vld [vmem:[#allocation3 + $0x10] sm:$0xf]
    %v85 = vld [vmem:[#allocation3 + $0x14] sm:$0xf]
    %v86 = vld [vmem:[#allocation3 + $0x18] sm:$0xf]
    %v87 = vld [vmem:[#allocation3 + $0x1c] sm:$0xf]
    %v88 = vld [vmem:[#allocation3 + $0x20] sm:$0xf]
    %v89 = vld [vmem:[#allocation3 + $0x24] sm:$0xf]
    %v90 = vld [vmem:[#allocation3 + $0x28] sm:$0xf]
    %v91 = vld [vmem:[#allocation3 + $0x2c] sm:$0xf]
    %v92 = vld [vmem:[#allocation3 + $0x30] sm:$0xf]
    %v93 = vld [vmem:[#allocation3 + $0x34] sm:$0xf]
    %v94 = vld [vmem:[#allocation3 + $0x38] sm:$0xf]
    %v95 = vld [vmem:[#allocation3 + $0x3c] sm:$0xf]
    %v96 = vld [vmem:[#allocation6] sm:$0xf]
    %v97 = vld [vmem:[#allocation6 + $0x4] sm:$0xf]
    %v98 = vld [vmem:[#allocation6 + $0x8] sm:$0xf]
    %v99 = vld [vmem:[#allocation6 + $0xc] sm:$0xf]
    %v100 = vld [vmem:[#allocation6 + $0x10] sm:$0xf]
    %v101 = vld [vmem:[#allocation6 + $0x14] sm:$0xf]
    %v102 = vld [vmem:[#allocation6 + $0x18] sm:$0xf]
    %v103 = vld [vmem:[#allocation6 + $0x1c] sm:$0xf]
    %v104 = vld [vmem:[#allocation6 + $0x20] sm:$0xf]
    %v105 = vld [vmem:[#allocation6 + $0x24] sm:$0xf]
    %v106 = vld [vmem:[#allocation6 + $0x28] sm:$0xf]
    %v107 = vld [vmem:[#allocation6 + $0x2c] sm:$0xf]
    %v108 = vld [vmem:[#allocation6 + $0x30] sm:$0xf]
    %v109 = vld [vmem:[#allocation6 + $0x34] sm:$0xf]
    %v110 = vld [vmem:[#allocation6 + $0x38] sm:$0xf]
    %v111 = vld [vmem:[#allocation6 + $0x3c] sm:$0xf]
    %v128 = vunpack.c.l.b16 %v80
    %v129 = vunpack.c.l.b16 %v81
    %v130 = vunpack.c.l.b16 %v82
    %v131 = vunpack.c.l.b16 %v83
    %v132 = vunpack.c.l.b16 %v84
    %v133 = vunpack.c.l.b16 %v85
    %v134 = vunpack.c.l.b16 %v86
    %v135 = vunpack.c.l.b16 %v87
    %v136 = vunpack.c.l.b16 %v88
    %v137 = vunpack.c.l.b16 %v89
    %v138 = vunpack.c.l.b16 %v90
    %v139 = vunpack.c.l.b16 %v91
    %v140 = vunpack.c.l.b16 %v92
    %v141 = vunpack.c.l.b16 %v93
    %v142 = vunpack.c.l.b16 %v94
    %v143 = vunpack.c.l.b16 %v95
    %v144 = vpack.c.b16 %v129, %v128
    %v145 = vpack.c.b16 %v131, %v130
    %v146 = vpack.c.b16 %v133, %v132
    %v147 = vpack.c.b16 %v135, %v134
    %v148 = vpack.c.b16 %v137, %v136
    %v149 = vpack.c.b16 %v139, %v138
    %v150 = vpack.c.b16 %v141, %v140
    %v151 = vpack.c.b16 %v143, %v142
    %v176 = vunpack.c.l.b16 %v96
    %v177 = vunpack.c.l.b16 %v97
    %v178 = vunpack.c.l.b16 %v98
    %v179 = vunpack.c.l.b16 %v99
    %v180 = vunpack.c.l.b16 %v100
    %v181 = vunpack.c.l.b16 %v101
    %v182 = vunpack.c.l.b16 %v102
    %v183 = vunpack.c.l.b16 %v103
    %v184 = vunpack.c.l.b16 %v104
    %v185 = vunpack.c.l.b16 %v105
    %v186 = vunpack.c.l.b16 %v106
    %v187 = vunpack.c.l.b16 %v107
    %v188 = vunpack.c.l.b16 %v108
    %v189 = vunpack.c.l.b16 %v109
    %v190 = vunpack.c.l.b16 %v110
    %v191 = vunpack.c.l.b16 %v111
    %v192 = vpack.c.b16 %v177, %v176
    %v193 = vpack.c.b16 %v179, %v178
    %v194 = vpack.c.b16 %v181, %v180
    %v195 = vpack.c.b16 %v183, %v182
    %v196 = vpack.c.b16 %v185, %v184
    %v197 = vpack.c.b16 %v187, %v186
    %v198 = vpack.c.b16 %v189, %v188
    %v199 = vpack.c.b16 %v191, %v190
    %208 = vmatpush.bf16.msra.mxu0 %v199
    %209 = vmatpush.bf16.msra.mxu0 %v198
    %210 = vmatpush.bf16.msra.mxu0 %v197
    %211 = vmatpush.bf16.msra.mxu0 %v196
    %212 = vmatpush.bf16.msra.mxu0 %v195
    %213 = vmatpush.bf16.msra.mxu0 %v194
    %214 = vmatpush.bf16.msra.mxu0 %v193
    %215 = vmatpush.bf16.msra.mxu0 %v192
    %216 = vmatmul.bf16.gmra.mxu0 %v144
    %v217 = vpop.f32.mrf.mxu0
    %v218 = vadd.f32 0.0, %v217
    %v219 = vpop.f32.mrf.mxu0
    %v220 = vadd.f32 0.0, %v219
    %221 = vmatmul.bf16.gmra.mxu0 %v145
    %v222 = vpop.f32.mrf.mxu0
    %v223 = vadd.f32 0.0, %v222
    %v224 = vpop.f32.mrf.mxu0
    %v225 = vadd.f32 0.0, %v224
    %226 = vmatmul.bf16.gmra.mxu0 %v146
    %v227 = vpop.f32.mrf.mxu0
    %v228 = vadd.f32 0.0, %v227
    %v229 = vpop.f32.mrf.mxu0
    %v230 = vadd.f32 0.0, %v229
    %231 = vmatmul.bf16.gmra.mxu0 %v147
    %v232 = vpop.f32.mrf.mxu0
    %v233 = vadd.f32 0.0, %v232
    %v234 = vpop.f32.mrf.mxu0
    %v235 = vadd.f32 0.0, %v234
    %236 = vmatmul.bf16.gmra.mxu0 %v148
    %v237 = vpop.f32.mrf.mxu0
    %v238 = vadd.f32 0.0, %v237
    %v239 = vpop.f32.mrf.mxu0
    %v240 = vadd.f32 0.0, %v239
    %241 = vmatmul.bf16.gmra.mxu0 %v149
    %v242 = vpop.f32.mrf.mxu0
    %v243 = vadd.f32 0.0, %v242
    %v244 = vpop.f32.mrf.mxu0
    %v245 = vadd.f32 0.0, %v244
    %246 = vmatmul.bf16.gmra.mxu0 %v150
    %v247 = vpop.f32.mrf.mxu0
    %v248 = vadd.f32 0.0, %v247
    %v249 = vpop.f32.mrf.mxu0
    %v250 = vadd.f32 0.0, %v249
    %251 = vmatmul.bf16.gmra.mxu0 %v151
    %v252 = vpop.f32.mrf.mxu0
    %v253 = vadd.f32 0.0, %v252
    %v254 = vpop.f32.mrf.mxu0
    %v255 = vadd.f32 0.0, %v254
    %256 = vdwg.mxu0
    %v257 = vadd.f32 %v64, %v218
    %v258 = vadd.f32 %v65, %v220
    %v259 = vadd.f32 %v66, %v223
    %v260 = vadd.f32 %v67, %v225
    %v261 = vadd.f32 %v68, %v228
    %v262 = vadd.f32 %v69, %v230
    %v263 = vadd.f32 %v70, %v233
    %v264 = vadd.f32 %v71, %v235
    %v265 = vadd.f32 %v72, %v238
    %v266 = vadd.f32 %v73, %v240
    %v267 = vadd.f32 %v74, %v243
    %v268 = vadd.f32 %v75, %v245
    %v269 = vadd.f32 %v76, %v248
    %v270 = vadd.f32 %v77, %v250
    %v271 = vadd.f32 %v78, %v253
    %v272 = vadd.f32 %v79, %v255
    %273 = vst [vmem:[#allocation2] sm:$0xff] %v257
    %274 = vst [vmem:[#allocation2 + $0x8] sm:$0xff] %v258
    %275 = vst [vmem:[#allocation2 + $0x10] sm:$0xff] %v259
    %276 = vst [vmem:[#allocation2 + $0x18] sm:$0xff] %v260
    %277 = vst [vmem:[#allocation2 + $0x20] sm:$0xff] %v261
    %278 = vst [vmem:[#allocation2 + $0x28] sm:$0xff] %v262
    %279 = vst [vmem:[#allocation2 + $0x30] sm:$0xff] %v263
    %280 = vst [vmem:[#allocation2 + $0x38] sm:$0xff] %v264
    %281 = vst [vmem:[#allocation2 + $0x40] sm:$0xff] %v265
    %282 = vst [vmem:[#allocation2 + $0x48] sm:$0xff] %v266
    %283 = vst [vmem:[#allocation2 + $0x50] sm:$0xff] %v267
    %284 = vst [vmem:[#allocation2 + $0x58] sm:$0xff] %v268
    %285 = vst [vmem:[#allocation2 + $0x60] sm:$0xff] %v269
    %286 = vst [vmem:[#allocation2 + $0x68] sm:$0xff] %v270
    %287 = vst [vmem:[#allocation2 + $0x70] sm:$0xff] %v271
    %288 = vst [vmem:[#allocation2 + $0x78] sm:$0xff] %v272
    // Predicated region
    $region22: #{tpu_custom_call.1} parent=1 // pred_check
      %p289 = pneg %p44
    $region23: #{tpu_custom_call.1} parent=1 // pred_check_branch
      %291 = sbr.rel (%p289) target = $region25
    $region24: #{tpu_custom_call.1} parent=1 // pred_region
      %v292 = vld [vmem:[#allocation2] sm:$0xff]
      %v293 = vld [vmem:[#allocation2 + $0x8] sm:$0xff]
      %v294 = vld [vmem:[#allocation2 + $0x10] sm:$0xff]
      %v295 = vld [vmem:[#allocation2 + $0x18] sm:$0xff]
      %v296 = vld [vmem:[#allocation2 + $0x20] sm:$0xff]
      %v297 = vld [vmem:[#allocation2 + $0x28] sm:$0xff]
      %v298 = vld [vmem:[#allocation2 + $0x30] sm:$0xff]
      %v299 = vld [vmem:[#allocation2 + $0x38] sm:$0xff]
      %v300 = vld [vmem:[#allocation2 + $0x40] sm:$0xff]
      %v301 = vld [vmem:[#allocation2 + $0x48] sm:$0xff]
      %v302 = vld [vmem:[#allocation2 + $0x50] sm:$0xff]
      %v303 = vld [vmem:[#allocation2 + $0x58] sm:$0xff]
      %v304 = vld [vmem:[#allocation2 + $0x60] sm:$0xff]
      %v305 = vld [vmem:[#allocation2 + $0x68] sm:$0xff]
      %v306 = vld [vmem:[#allocation2 + $0x70] sm:$0xff]
      %v307 = vld [vmem:[#allocation2 + $0x78] sm:$0xff]
      %v308 = vpack.c.bf16 %v292, %v292
      %v309 = vpack.c.bf16 %v293, %v293
      %v310 = vpack.c.bf16 %v294, %v294
      %v311 = vpack.c.bf16 %v295, %v295
      %v312 = vpack.c.bf16 %v296, %v296
      %v313 = vpack.c.bf16 %v297, %v297
      %v314 = vpack.c.bf16 %v298, %v298
      %v315 = vpack.c.bf16 %v299, %v299
      %v316 = vpack.c.bf16 %v300, %v300
      %v317 = vpack.c.bf16 %v301, %v301
      %v318 = vpack.c.bf16 %v302, %v302
      %v319 = vpack.c.bf16 %v303, %v303
      %v320 = vpack.c.bf16 %v304, %v304
      %v321 = vpack.c.bf16 %v305, %v305
      %v322 = vpack.c.bf16 %v306, %v306
      %v323 = vpack.c.bf16 %v307, %v307
      %324 = vst [vmem:[#allocation8] sm:$0xf] %v308
      %325 = vst [vmem:[#allocation8 + $0x4] sm:$0xf] %v309
      %326 = vst [vmem:[#allocation8 + $0x8] sm:$0xf] %v310
      %327 = vst [vmem:[#allocation8 + $0xc] sm:$0xf] %v311
      %328 = vst [vmem:[#allocation8 + $0x10] sm:$0xf] %v312
      %329 = vst [vmem:[#allocation8 + $0x14] sm:$0xf] %v313
      %330 = vst [vmem:[#allocation8 + $0x18] sm:$0xf] %v314
      %331 = vst [vmem:[#allocation8 + $0x1c] sm:$0xf] %v315
      %332 = vst [vmem:[#allocation8 + $0x20] sm:$0xf] %v316
      %333 = vst [vmem:[#allocation8 + $0x24] sm:$0xf] %v317
      %334 = vst [vmem:[#allocation8 + $0x28] sm:$0xf] %v318
      %335 = vst [vmem:[#allocation8 + $0x2c] sm:$0xf] %v319
      %336 = vst [vmem:[#allocation8 + $0x30] sm:$0xf] %v320
      %337 = vst [vmem:[#allocation8 + $0x34] sm:$0xf] %v321
      %338 = vst [vmem:[#allocation8 + $0x38] sm:$0xf] %v322
      %339 = vst [vmem:[#allocation8 + $0x3c] sm:$0xf] %v323
    $region25: #{tpu_custom_call.1} parent=1 // pred_fallthru
      _
    // Predicated region
    $region26: #{tpu_custom_call.1} parent=1 // pred_check
      _
    $region27: #{tpu_custom_call.1} parent=1 // pred_check_branch
      %341 = sbr.rel (0) target = $region29
    $region28: #{tpu_custom_call.1} parent=1 // pred_region
      %343 = vsyncadd [#allocation5], 0
      %s344 = sshll.u32 [#allocation8], 4
      %s345 = int_to_ptr.vmem [resolvable:$true] %s344
      %s346 = sshll.u32 %s2, 4
      %s347 = int_to_ptr.hbm [resolvable:$true] %s346
      %352 = dma.vmem_to_hbm [thread:$0]  %s345, 1024, %s347, [#allocation5], 64, 64, 4
    $region29: #{tpu_custom_call.1} parent=1 // pred_fallthru
      _
    // Predicated region
    $region30: #{tpu_custom_call.1} parent=1 // pred_check
      _
    $region31: #{tpu_custom_call.1} parent=1 // pred_check_branch
      %354 = sbr.rel (0) target = $region33
    $region32: #{tpu_custom_call.1} parent=1 // pred_region
      %356 = dma.done [#allocation5], 1024
    $region33: #{tpu_custom_call.1} parent=1 // pred_fallthru
      _
    %357 = vsyncpa [#allocation4], 1
    %358 = vsyncpa [#allocation7], 1
    %359 = vsyncpa [#allocation5], 1

</llo_original>
